<compile_context>
chip_gen: v5e
topology: v5e:2x2
jax: 0.10.0
libtpu: 0.0.40
codegen_flags: <defaults>
</compile_context>

<pallas_src>
import functools

import jax
import jax.numpy as jnp
from jax.experimental import pallas as pl
from jax.experimental.pallas import tpu as pltpu


def conv2x2_kernel(x_ref, w_ref, b_ref, o_ref, *, stride, Ho, Wo):
    """Per-image fused 2x2 convolution with bias.

    x_ref: (Cin, H, W)      input image (batch dim squeezed by the BlockSpec)
    w_ref: (Cout, 4*Cin)    weights, contraction index ordered (kh, kw, cin)
    b_ref: (Cout, 1)        bias
    o_ref: (Cout, Ho*Wo)    lane-dense output slab (reshaped outside, for free)
    """
    Cin = x_ref.shape[0]

    # Build the four (Cin, Ho, Wo) tap slabs.
    if stride == 1:
        x = x_ref[...]                                         # read once
        taps = [x[:, kh:kh + Ho, kw:kw + Wo]
                for kh in range(2) for kw in range(2)]
    else:
        # kernel==2, stride>=2: non-overlapping taps via strided windows.
        # TODO(synk): stride>1 path is implemented but not exercised by the
        # stride=1 demo below; for the CMT stride=2 case a patchify relayout
        # would avoid the lane-strided reads entirely.
        taps = [x_ref[:, pl.ds(kh, Ho, stride=stride), pl.ds(kw, Wo, stride=stride)]
                for kh in range(2) for kw in range(2)]

    # im2col: stack taps along the contraction axis -> (4*Cin, Ho*Wo).
    # All output rows and all 4 taps are fused into a single MXU dot
    # (K = 4*Cin, N = Ho*Wo) instead of 4*Ho per-row dots.
    slab = jnp.concatenate(taps, axis=0).reshape(4 * Cin, Ho * Wo)

    # Native-dtype operands on the MXU; f32 accumulation.
    acc = jnp.dot(w_ref[...], slab, preferred_element_type=jnp.float32)

    # Bias added once per slab, in f32; single downcast at the store.
    acc = acc + b_ref[...].astype(jnp.float32)
    o_ref[...] = acc.astype(o_ref.dtype)


def conv2x2_forward(x, weight, bias, stride=1):
    """x: (B, Cin, H, W); weight: (Cout, Cin, 2, 2); bias: (Cout,) -> (B, Cout, Ho, Wo)."""
    B, Cin, H, W = x.shape
    Cout = weight.shape[0]
    Ho = (H - 2) // stride + 1
    Wo = (W - 2) // stride + 1

    # Parameter-only relayouts (negligible HBM traffic); activations stay NCHW.
    # K ordering (kh, kw, cin) matches the tap-concat order in the kernel.
    w_mat = jnp.transpose(weight, (0, 2, 3, 1)).reshape(Cout, 4 * Cin)
    b2 = bias.reshape(Cout, 1)

    kernel = functools.partial(conv2x2_kernel, stride=stride, Ho=Ho, Wo=Wo)

    out = pl.pallas_call(
        kernel,
        out_shape=jax.ShapeDtypeStruct((B, Cout, Ho * Wo), x.dtype),
        grid=(B,),
        in_specs=[
            pl.BlockSpec((None, Cin, H, W), lambda b: (b, 0, 0, 0)),
            pl.BlockSpec((Cout, 4 * Cin), lambda b: (0, 0)),
            pl.BlockSpec((Cout, 1), lambda b: (0, 0)),
        ],
        out_specs=pl.BlockSpec((None, Cout, Ho * Wo), lambda b: (b, 0, 0)),
        compiler_params=pltpu.CompilerParams(
            dimension_semantics=("parallel",)),
    )(x, w_mat, b2)

    # Contiguous metadata reshape back to image layout (no extra HBM pass).
    return out.reshape(B, Cout, Ho, Wo)


def conv2x2_reference(x, weight, bias, stride=1):
    """Pure-JAX reference (lax.conv is cross-correlation, matching nn.Conv2d)."""
    y = jax.lax.conv_general_dilated(
        x, weight, window_strides=(stride, stride), padding="VALID",
        dimension_numbers=("NCHW", "OIHW", "NCHW"))
    return y + bias.reshape(1, -1, 1, 1)


if __name__ == "__main__":
    B, Cin, Cout, H, W = 2, 4, 8, 16, 16
    stride = 1  # module default

    key = jax.random.PRNGKey(0)
    kx, kw, kb = jax.random.split(key, 3)
    x = jax.random.normal(kx, (B, Cin, H, W), dtype=jnp.float32)
    bound = 1.0 / (Cin * 2 * 2) ** 0.5     # PyTorch Conv2d fan_in init bound
    weight = jax.random.uniform(kw, (Cout, Cin, 2, 2), jnp.float32, -bound, bound)
    bias = jax.random.uniform(kb, (Cout,), jnp.float32, -bound, bound)

    out = conv2x2_forward(x, weight, bias, stride=stride)
    out = jax.block_until_ready(out)

    ref = conv2x2_reference(x, weight, bias, stride=stride)
    Ho = (H - 2) // stride + 1
    Wo = (W - 2) // stride + 1
    assert out.shape == (B, Cout, Ho, Wo)
    assert jnp.allclose(out, ref, atol=1e-5, rtol=1e-5), "mismatch vs reference"

    print("KERNEL_OK")
</pallas_src>

<mosaic_0001>
module attributes {stable_mosaic.version = 11 : i64} {
  func.func @conv2x2_kernel(%arg0: i32, %arg1: memref<1x4x16x16xf32, #tpu.memory_space<vmem>>, %arg2: memref<8x16xf32, #tpu.memory_space<vmem>>, %arg3: memref<8x1xf32, #tpu.memory_space<vmem>>, %arg4: memref<1x8x225xf32, #tpu.memory_space<vmem>>) attributes {dimension_semantics = [#tpu.dimension_semantics<parallel>], iteration_bounds = array<i64: 2>, scalar_prefetch = 0 : i64, scratch_operands = 0 : i64, tpu.core_type = #tpu.core_type<tc>, window_params = [{transform_indices = @transform_0, window_bounds = array<i64: 1, 4, 16, 16>}, {pipeline_mode = #tpu.pipeline_mode<synchronous>, transform_indices = @transform_1, window_bounds = array<i64: 8, 16>}, {pipeline_mode = #tpu.pipeline_mode<synchronous>, transform_indices = @transform_2, window_bounds = array<i64: 8, 1>}, {transform_indices = @transform_3, window_bounds = array<i64: 1, 8, 225>}]} {
    %c0 = arith.constant 0 : index
    %c0_0 = arith.constant 0 : index
    %c0_1 = arith.constant 0 : index
    %c0_2 = arith.constant 0 : index
    %0 = vector.load %arg1[%c0, %c0_0, %c0_1, %c0_2] : memref<1x4x16x16xf32, #tpu.memory_space<vmem>>, vector<1x4x16x16xf32>
    %1 = vector.shape_cast %0 : vector<1x4x16x16xf32> to vector<4x16x16xf32>
    %2 = vector.extract_strided_slice %1 {offsets = [0, 0, 0], sizes = [4, 15, 15], strides = [1, 1, 1]} : vector<4x16x16xf32> to vector<4x15x15xf32>
    %3 = vector.extract_strided_slice %1 {offsets = [0, 0, 1], sizes = [4, 15, 15], strides = [1, 1, 1]} : vector<4x16x16xf32> to vector<4x15x15xf32>
    %4 = vector.extract_strided_slice %1 {offsets = [0, 1, 0], sizes = [4, 15, 15], strides = [1, 1, 1]} : vector<4x16x16xf32> to vector<4x15x15xf32>
    %5 = vector.extract_strided_slice %1 {offsets = [0, 1, 1], sizes = [4, 15, 15], strides = [1, 1, 1]} : vector<4x16x16xf32> to vector<4x15x15xf32>
    %6 = tpu.concatenate %2, %3, %4, %5 in 0 : vector<4x15x15xf32>, vector<4x15x15xf32>, vector<4x15x15xf32>, vector<4x15x15xf32> -> vector<16x15x15xf32>
    %7 = vector.shape_cast %6 : vector<16x15x15xf32> to vector<16x225xf32>
    %c0_3 = arith.constant 0 : index
    %c0_4 = arith.constant 0 : index
    %8 = vector.load %arg2[%c0_3, %c0_4] : memref<8x16xf32, #tpu.memory_space<vmem>>, vector<8x16xf32>
    %cst = arith.constant dense<0.000000e+00> : vector<8x225xf32>
    %9 = tpu.matmul %8, %7, %cst {dimension_numbers = #tpu.dot_dimension_numbers<[1], [0], [0], [1], [0, 0, 1, 1], [], []>} : vector<8x16xf32>, vector<16x225xf32>, vector<8x225xf32> -> vector<8x225xf32>
    %c0_5 = arith.constant 0 : index
    %c0_6 = arith.constant 0 : index
    %10 = vector.load %arg3[%c0_5, %c0_6] : memref<8x1xf32, #tpu.memory_space<vmem>>, vector<8x1xf32>
    %11 = vector.broadcast %10 : vector<8x1xf32> to vector<8x225xf32>
    %12 = arith.addf %9, %11 : vector<8x225xf32>
    %c0_7 = arith.constant 0 : index
    %c0_8 = arith.constant 0 : index
    %c0_9 = arith.constant 0 : index
    %13 = vector.load %arg4[%c0_7, %c0_8, %c0_9] : memref<1x8x225xf32, #tpu.memory_space<vmem>>, vector<1x8x225xf32>
    %14 = vector.shape_cast %13 : vector<1x8x225xf32> to vector<8x225xf32>
    %15 = vector.shape_cast %12 : vector<8x225xf32> to vector<1x8x225xf32>
    tpu.vector_store %arg4[%c0_7, %c0_8, %c0_9], %15 {strides = array<i32>} : memref<1x8x225xf32, #tpu.memory_space<vmem>>, vector<1x8x225xf32>,
    return
  }
  func.func @transform_0(%arg0: i32) -> (i32, i32, i32, i32) {
    %c0_i32 = arith.constant 0 : i32
    %c0_i32_0 = arith.constant 0 : i32
    %c0_i32_1 = arith.constant 0 : i32
    %c0_i32_2 = arith.constant 0 : i32
    return %arg0, %c0_i32, %c0_i32_0, %c0_i32_1 : i32, i32, i32, i32
  }
  func.func @transform_1(%arg0: i32) -> (i32, i32) {
    %c0_i32 = arith.constant 0 : i32
    %c0_i32_0 = arith.constant 0 : i32
    %c0_i32_1 = arith.constant 0 : i32
    return %c0_i32, %c0_i32_0 : i32, i32
  }
  func.func @transform_2(%arg0: i32) -> (i32, i32) {
    %c0_i32 = arith.constant 0 : i32
    %c0_i32_0 = arith.constant 0 : i32
    %c0_i32_1 = arith.constant 0 : i32
    return %c0_i32, %c0_i32_0 : i32, i32
  }
  func.func @transform_3(%arg0: i32) -> (i32, i32, i32) {
    %c0_i32 = arith.constant 0 : i32
    %c0_i32_0 = arith.constant 0 : i32
    %c0_i32_1 = arith.constant 0 : i32
    return %arg0, %c0_i32, %c0_i32_0 : i32, i32, i32
  }
}

</mosaic_0001>

<llo_original>
// kernel: tpu_custom_call.1
$region0: #{tpu_custom_call.1}
  #allocation0 [shape = 'u32[]', space=smem, size = 0x4, offset = 0x4, fixed_abs, tag = 'smem constant byte address 0x4 - core index']
  #allocation1 [shape = 'u32[72,128]{1,0:T(1,128)}', space=vmem, size = 0x9000, scoped, tag = 'internal scratch']
  %s0 = inlined_call_operand.hbm [shape: f32[2,4,16,16], index: 0, kind: input, shape index: {}]
  %s1 = inlined_call_operand.vmem [shape: f32[8,16], index: 1, kind: input, shape index: {}]
  %s2 = inlined_call_operand.vmem [shape: f32[8,1], index: 2, kind: input, shape index: {}]
  %s3 = inlined_call_operand.hbm [shape: f32[2,8,225], index: 3, kind: output, shape index: {}]
  %s4 = sld [smem:[#allocation0]]
  $region49: #{tpu_custom_call.1} parent=0
    _
  %s6 = ssub.s32 1, %s4
  %s7 = scalar_select 0, %s6, %s4
  $region1: #{tpu_custom_call.1} parent=0
    #allocation2 [shape = 'u8[65536]{0}', space=vmem, size = 0x10000, scoped, tag = 'input window, operand 0']
    #allocation3 [shape = 's32[2]{0}', space=sflag, size = 0x8, scoped, tag = 'scoped memory for tpu_custom_call.1']
    #allocation4 [shape = 's32[2]{0}', space=sflag, size = 0x8, scoped, tag = 'scoped memory for tpu_custom_call.1']
    #allocation5 [shape = 'u8[16384]{0}', space=vmem, size = 0x4000, scoped, tag = 'output window, operand 0']
    %8 = vsyncpa [#allocation3], 0
    %s9 = scalar_lea.sflag [#allocation3], 1
    %10 = vsyncpa %s9, 0
    %11 = vsyncpa [#allocation4], 0
    %s12 = scalar_lea.sflag [#allocation4], 1
    %13 = vsyncpa %s12, 0
    loop: start=0, step=1, limit=4
    $region2: #{tpu_custom_call.1} parent=1 // loop_pre_header
      _
    $region3: #{tpu_custom_call.1} parent=1 // loop_header
      %s15 = sphi 0, %s19
      %p16 = scmp.ge.s32.totalorder %s15, 4
      %s25 = sphi 0, %s27
      %s28 = sphi 0, %s25
      %s29 = sphi 0, %s28
      %s45 = sphi 0, %s29
      %s49 = sphi 0, %s49
      %s51 = sphi 0, %s49
      %s52 = sphi 0, %s51
      %s66 = sphi 0, %s52
      %s70 = sphi 0, %s70
      %s72 = sphi 0, %s70
      %s73 = sphi 0, %s72
      %s87 = sphi 0, %s73
      %s93 = sphi 0, %s95
      %s96 = sphi 0, %s93
      %s97 = sphi 0, %s96
      %s113 = sphi 0, %s97
    $region4: #{tpu_custom_call.1} parent=1 // loop_header_branch
      %18 = sbr.rel (%p16) target = $region8
    $region5: #{tpu_custom_call.1} parent=1 // loop_body
      %s20 = ssub.s32 %s15, 1
      %s21 = ssub.s32 %s15, 2
      %s22 = sadd.s32 %s15, 1
      %s23 = ssub.s32 %s15, %s22
      %p24 = scmp.eq.s32.totalorder %s23, 0
      %s26 = sadd.s32 %s25, 1
      %s27 = scalar_select %p24, %s25, %s26
      %p30 = pneg %p24
      %p31 = scmp.eq.s32.totalorder %s15, 1
      %p32 = por %p30, %p31
      %p33 = scmp.ne.s32.totalorder %s25, %s28
      %p34 = scmp.eq.s32.totalorder %s15, 0
      %p35 = por %p33, %p34
      %p36 = scmp.ne.s32.totalorder %s25, %s28
      %p37 = scmp.eq.s32.totalorder %s20, 1
      %p38 = por %p36, %p37
      %p39 = scmp.ne.s32.totalorder %s28, %s29
      %p40 = scmp.eq.s32.totalorder %s20, 0
      %p41 = por %p39, %p40
      %p42 = scmp.ne.s32.totalorder %s28, %s29
      %p43 = scmp.eq.s32.totalorder %s21, 1
      %p44 = por %p42, %p43
      %p46 = scmp.ne.s32.totalorder %s29, %s45
      %p47 = scmp.eq.s32.totalorder %s21, 0
      %p48 = por %p46, %p47
      %s50 = sadd.s32 %s49, 1
      %p53 = scmp.eq.s32.totalorder %s15, 1
      %p54 = scmp.ne.s32.totalorder %s49, %s51
      %p55 = scmp.eq.s32.totalorder %s15, 0
      %p56 = por %p54, %p55
      %p57 = scmp.ne.s32.totalorder %s49, %s51
      %p58 = scmp.eq.s32.totalorder %s20, 1
      %p59 = por %p57, %p58
      %p60 = scmp.ne.s32.totalorder %s51, %s52
      %p61 = scmp.eq.s32.totalorder %s20, 0
      %p62 = por %p60, %p61
      %p63 = scmp.ne.s32.totalorder %s51, %s52
      %p64 = scmp.eq.s32.totalorder %s21, 1
      %p65 = por %p63, %p64
      %p67 = scmp.ne.s32.totalorder %s52, %s66
      %p68 = scmp.eq.s32.totalorder %s21, 0
      %p69 = por %p67, %p68
      %s71 = sadd.s32 %s70, 1
      %p74 = scmp.eq.s32.totalorder %s15, 1
      %p75 = scmp.ne.s32.totalorder %s70, %s72
      %p76 = scmp.eq.s32.totalorder %s15, 0
      %p77 = por %p75, %p76
      %p78 = scmp.ne.s32.totalorder %s70, %s72
      %p79 = scmp.eq.s32.totalorder %s20, 1
      %p80 = por %p78, %p79
      %p81 = scmp.ne.s32.totalorder %s72, %s73
      %p82 = scmp.eq.s32.totalorder %s20, 0
      %p83 = por %p81, %p82
      %p84 = scmp.ne.s32.totalorder %s72, %s73
      %p85 = scmp.eq.s32.totalorder %s21, 1
      %p86 = por %p84, %p85
      %p88 = scmp.ne.s32.totalorder %s73, %s87
      %p89 = scmp.eq.s32.totalorder %s21, 0
      %p90 = por %p88, %p89
      %s91 = ssub.s32 %s15, %s22
      %p92 = scmp.eq.s32.totalorder %s91, 0
      %s94 = sadd.s32 %s93, 1
      %s95 = scalar_select %p92, %s93, %s94
      %p98 = pneg %p92
      %p99 = scmp.eq.s32.totalorder %s15, 1
      %p100 = por %p98, %p99
      %p101 = scmp.ne.s32.totalorder %s93, %s96
      %p102 = scmp.eq.s32.totalorder %s15, 0
      %p103 = por %p101, %p102
      %p104 = scmp.ne.s32.totalorder %s93, %s96
      %p105 = scmp.eq.s32.totalorder %s20, 1
      %p106 = por %p104, %p105
      %p107 = scmp.ne.s32.totalorder %s96, %s97
      %p108 = scmp.eq.s32.totalorder %s20, 0
      %p109 = por %p107, %p108
      %p110 = scmp.ne.s32.totalorder %s96, %s97
      %p111 = scmp.eq.s32.totalorder %s21, 1
      %p112 = por %p110, %p111
      %p114 = scmp.ne.s32.totalorder %s97, %s113
      %p115 = scmp.eq.s32.totalorder %s21, 0
      %p116 = por %p114, %p115
      %p117 = scmp.le.s32.totalorder 1, %s15
      %p118 = scmp.lt.s32.totalorder %s15, 3
      %p119 = pnand %p117, %p118
      %p120 = pneg %p119
      // Predicated region
      $region9: #{tpu_custom_call.1} parent=5 // pred_check
        _
      $region10: #{tpu_custom_call.1} parent=5 // pred_check_branch
        %122 = sbr.rel (%p119) target = $region12
      $region11: #{tpu_custom_call.1} parent=5 // pred_region
        %s123 = ssub.s32 %s15, 1
        // Predicated region
        $region13: #{tpu_custom_call.1} parent=11 // pred_check
          %p124 = pneg %p62
        $region14: #{tpu_custom_call.1} parent=11 // pred_check_branch
          %126 = sbr.rel (%p124) target = $region16
        $region15: #{tpu_custom_call.1} parent=11 // pred_region
          _
        $region16: #{tpu_custom_call.1} parent=11 // pred_fallthru
          _
        // Predicated region
        $region17: #{tpu_custom_call.1} parent=11 // pred_check
          %p127 = pneg %p83
        $region18: #{tpu_custom_call.1} parent=11 // pred_check_branch
          %129 = sbr.rel (%p127) target = $region20
        $region19: #{tpu_custom_call.1} parent=11 // pred_region
          _
        $region20: #{tpu_custom_call.1} parent=11 // pred_fallthru
          _
      $region12: #{tpu_custom_call.1} parent=5 // pred_fallthru
        _
      %p130 = scmp.lt.s32.totalorder %s15, 2
      // Predicated region
      $region21: #{tpu_custom_call.1} parent=5 // pred_check
        %p131 = pneg %p130
      $region22: #{tpu_custom_call.1} parent=5 // pred_check_branch
        %133 = sbr.rel (%p131) target = $region24
      $region23: #{tpu_custom_call.1} parent=5 // pred_region
        // Predicated region
        $region25: #{tpu_custom_call.1} parent=23 // pred_check
          %p134 = pneg %p35
        $region26: #{tpu_custom_call.1} parent=23 // pred_check_branch
          %136 = sbr.rel (%p134) target = $region28
        $region27: #{tpu_custom_call.1} parent=23 // pred_region
          %s137 = sand.u32 %s25, 1
          %s138 = scalar_lea.sflag [#allocation3], %s137
          %s139 = sand.u32 %s25, 1
          %s140 = smul.addr %s139, 64
          %s141 = scalar_lea.vmem [#allocation2], %s140
          %143 = vsyncadd %s138, 0
          %s144 = smul.addr %s15, 8
          %s145 = smul.addr %s144, 8
          %s146 = scalar_lea.hbm %s0, %s145
          %s147 = sshll.u32 %s146, 4
          %s148 = int_to_ptr.hbm [resolvable:$true] %s147
          %s149 = sshll.u32 %s141, 4
          %s150 = int_to_ptr.vmem [resolvable:$true] %s149
          %155 = dma.hbm_to_vmem [thread:$0]  %s148, 1024, %s150, %s138, 128, 128, 8
        $region28: #{tpu_custom_call.1} parent=23 // pred_fallthru
          _
      $region24: #{tpu_custom_call.1} parent=5 // pred_fallthru
        _
      %p156 = scmp.le.s32.totalorder 1, %s15
      %p157 = scmp.lt.s32.totalorder %s15, 3
      %p158 = pnand %p156, %p157
      %p159 = pneg %p158
      // Predicated region
      $region29: #{tpu_custom_call.1} parent=5 // pred_check
        _
      $region30: #{tpu_custom_call.1} parent=5 // pred_check_branch
        %161 = sbr.rel (%p158) target = $region32
      $region31: #{tpu_custom_call.1} parent=5 // pred_region
        %s162 = ssub.s32 %s15, 1
        %s163 = sand.u32 %s28, 1
        %s164 = scalar_lea.sflag [#allocation3], %s163
        %s165 = sand.u32 %s28, 1
        %s166 = smul.addr %s165, 64
        %s167 = scalar_lea.vmem [#allocation2], %s166
        // Predicated region
        $region33: #{tpu_custom_call.1} parent=31 // pred_check
          %p168 = pneg %p41
        $region34: #{tpu_custom_call.1} parent=31 // pred_check_branch
          %170 = sbr.rel (%p168) target = $region36
        $region35: #{tpu_custom_call.1} parent=31 // pred_region
          %172 = dma.done %s164, 1024
        $region36: #{tpu_custom_call.1} parent=31 // pred_fallthru
          _
        %s173 = sand.u32 %s28, 1
        %s174 = scalar_lea.sflag [#allocation3], %s173
        %s175 = sand.u32 %s28, 1
        %s176 = smul.addr %s175, 64
        %s177 = scalar_lea.vmem [#allocation2], %s176
        %p178 = pneg %p41
        %p179 = pneg %p38
        %p180 = pneg %p62
        %p181 = pneg %p59
        %p182 = pneg %p83
        %p183 = pneg %p80
        %p184 = pneg %p109
        %p185 = pneg %p106
        %s186 = sand.u32 %s96, 1
        %s187 = scalar_lea.sflag [#allocation4], %s186
        %s188 = sand.u32 %s96, 1
        %s189 = smul.addr %s188, 16
        %s190 = scalar_lea.vmem [#allocation5], %s189
        %v191 = vld [vmem:[%s167] sm:$0xff]
        %v192 = vld [vmem:[%s167 + $0x8] sm:$0xff]
        %v193 = vld [vmem:[%s167 + $0x10] sm:$0xff]
        %v194 = vld [vmem:[%s167 + $0x18] sm:$0xff]
        %v195 = vld [vmem:[%s167 + $0x20] sm:$0xff]
        %v196 = vld [vmem:[%s167 + $0x28] sm:$0xff]
        %v197 = vld [vmem:[%s167 + $0x30] sm:$0xff]
        %v198 = vld [vmem:[%s167 + $0x38] sm:$0xff]
        %207 = vrot.lane.b32.xlu0 %v191, 127
        %v208 = vpop.permute.xlu0 %207
        %209 = vrot.lane.b32.xlu0 %v192, 127
        %v210 = vpop.permute.xlu0 %209
        %211 = vrot.lane.b32.xlu0 %v193, 127
        %v212 = vpop.permute.xlu0 %211
        %213 = vrot.lane.b32.xlu0 %v194, 127
        %v214 = vpop.permute.xlu0 %213
        %215 = vrot.lane.b32.xlu0 %v195, 127
        %v216 = vpop.permute.xlu0 %215
        %217 = vrot.lane.b32.xlu0 %v196, 127
        %v218 = vpop.permute.xlu0 %217
        %219 = vrot.lane.b32.xlu0 %v197, 127
        %v220 = vpop.permute.xlu0 %219
        %221 = vrot.lane.b32.xlu0 %v198, 127
        %v222 = vpop.permute.xlu0 %221
        %vm231 = vcmask 1046528
        %v232 = vrot.slane %v191, 1
        %v233 = vrot.slane %v192, 1
        %v234 = vsel %vm231, %v232, %v233
        %v235 = vrot.slane %v193, 1
        %v236 = vrot.slane %v194, 1
        %v237 = vsel %vm231, %v235, %v236
        %v238 = vrot.slane %v195, 1
        %v239 = vrot.slane %v196, 1
        %v240 = vsel %vm231, %v238, %v239
        %v241 = vrot.slane %v197, 1
        %v242 = vrot.slane %v198, 1
        %v243 = vsel %vm231, %v241, %v242
        %252 = vrot.lane.b32.xlu0 %v234, 127
        %v253 = vpop.permute.xlu0 %252
        %254 = vrot.lane.b32.xlu0 %v233, 127
        %v255 = vpop.permute.xlu0 %254
        %256 = vrot.lane.b32.xlu0 %v237, 127
        %v257 = vpop.permute.xlu0 %256
        %258 = vrot.lane.b32.xlu0 %v236, 127
        %v259 = vpop.permute.xlu0 %258
        %260 = vrot.lane.b32.xlu0 %v240, 127
        %v261 = vpop.permute.xlu0 %260
        %262 = vrot.lane.b32.xlu0 %v239, 127
        %v263 = vpop.permute.xlu0 %262
        %264 = vrot.lane.b32.xlu0 %v243, 127
        %v265 = vpop.permute.xlu0 %264
        %266 = vrot.lane.b32.xlu0 %v242, 127
        %v267 = vpop.permute.xlu0 %266
        %v276 = vrot.slane %v195, 4
        %vm277 = vcmask 1047556
        %v278 = vsel %vm277, %v276, %v191
        %v279 = vrot.slane %v191, 4
        %v280 = vsel %vm277, %v195, %v279
        %v282 = vunpack.c.l.s4 1983009808
        %v283 = vunpack.c.0.s8 %v282
        %v284 = vperm.slane %v278, %v283
        %v286 = vunpack.c.l.s4 1983009808
        %v287 = vunpack.c.0.s8 %v286
        %v288 = vperm.slane %v280, %v287
        %v289 = vrot.slane %v197, 4
        %v290 = vsel %vm277, %v289, %v193
        %v291 = vrot.slane %v193, 4
        %v292 = vsel %vm277, %v197, %v291
        %v294 = vunpack.c.l.s4 1983009808
        %v295 = vunpack.c.0.s8 %v294
        %v296 = vperm.slane %v290, %v295
        %v298 = vunpack.c.l.s4 1983009808
        %v299 = vunpack.c.0.s8 %v298
        %v300 = vperm.slane %v292, %v299
        %v301 = vrot.slane %v216, 4
        %v302 = vsel %vm277, %v301, %v208
        %v303 = vrot.slane %v208, 4
        %v304 = vsel %vm277, %v216, %v303
        %v306 = vunpack.c.l.s4 1983009808
        %v307 = vunpack.c.0.s8 %v306
        %v308 = vperm.slane %v302, %v307
        %v310 = vunpack.c.l.s4 1983009808
        %v311 = vunpack.c.0.s8 %v310
        %v312 = vperm.slane %v304, %v311
        %v313 = vrot.slane %v220, 4
        %v314 = vsel %vm277, %v313, %v212
        %v315 = vrot.slane %v212, 4
        %v316 = vsel %vm277, %v220, %v315
        %v318 = vunpack.c.l.s4 1983009808
        %v319 = vunpack.c.0.s8 %v318
        %v320 = vperm.slane %v314, %v319
        %v322 = vunpack.c.l.s4 1983009808
        %v323 = vunpack.c.0.s8 %v322
        %v324 = vperm.slane %v316, %v323
        %v325 = vrot.slane %v296, 4
        %v326 = vsel %vm277, %v325, %v284
        %v327 = vrot.slane %v284, 4
        %v328 = vsel %vm277, %v296, %v327
        %v330 = vunpack.c.l.s4 1934713408
        %v331 = vunpack.c.0.s8 %v330
        %v332 = vperm.slane %v326, %v331
        %v334 = vunpack.c.l.s4 1934713408
        %v335 = vunpack.c.0.s8 %v334
        %v336 = vperm.slane %v328, %v335
        %v337 = vrot.slane %v300, 4
        %v338 = vsel %vm277, %v337, %v288
        %v339 = vrot.slane %v288, 4
        %v340 = vsel %vm277, %v300, %v339
        %v342 = vunpack.c.l.s4 1934713408
        %v343 = vunpack.c.0.s8 %v342
        %v344 = vperm.slane %v338, %v343
        %v346 = vunpack.c.l.s4 1934713408
        %v347 = vunpack.c.0.s8 %v346
        %v348 = vperm.slane %v340, %v347
        %v349 = vrot.slane %v320, 4
        %v350 = vsel %vm277, %v349, %v308
        %v351 = vrot.slane %v308, 4
        %v352 = vsel %vm277, %v320, %v351
        %v354 = vunpack.c.l.s4 1934713408
        %v355 = vunpack.c.0.s8 %v354
        %v356 = vperm.slane %v350, %v355
        %v358 = vunpack.c.l.s4 1934713408
        %v359 = vunpack.c.0.s8 %v358
        %v360 = vperm.slane %v352, %v359
        %v361 = vrot.slane %v324, 4
        %v362 = vsel %vm277, %v361, %v312
        %v363 = vrot.slane %v312, 4
        %v364 = vsel %vm277, %v324, %v363
        %v366 = vunpack.c.l.s4 1934713408
        %v367 = vunpack.c.0.s8 %v366
        %v368 = vperm.slane %v362, %v367
        %v370 = vunpack.c.l.s4 1934713408
        %v371 = vunpack.c.0.s8 %v370
        %v372 = vperm.slane %v364, %v371
        %v373 = vrot.slane %v356, 4
        %v374 = vsel %vm277, %v373, %v332
        %v375 = vrot.slane %v332, 4
        %v376 = vsel %vm277, %v356, %v375
        %v377 = vrot.slane %v360, 4
        %v378 = vsel %vm277, %v377, %v336
        %v379 = vrot.slane %v336, 4
        %v380 = vsel %vm277, %v360, %v379
        %v381 = vrot.slane %v368, 4
        %v382 = vsel %vm277, %v381, %v344
        %v383 = vrot.slane %v344, 4
        %v384 = vsel %vm277, %v368, %v383
        %v385 = vrot.slane %v372, 4
        %v386 = vsel %vm277, %v385, %v348
        %v387 = vrot.slane %v348, 4
        %v388 = vsel %vm277, %v372, %v387
        %v389 = vrot.slane %v240, 4
        %v390 = vsel %vm277, %v389, %v234
        %v391 = vrot.slane %v234, 4
        %v392 = vsel %vm277, %v240, %v391
        %v394 = vunpack.c.l.s4 1983009808
        %v395 = vunpack.c.0.s8 %v394
        %v396 = vperm.slane %v390, %v395
        %v398 = vunpack.c.l.s4 1983009808
        %v399 = vunpack.c.0.s8 %v398
        %v400 = vperm.slane %v392, %v399
        %v401 = vrot.slane %v243, 4
        %v402 = vsel %vm277, %v401, %v237
        %v403 = vrot.slane %v237, 4
        %v404 = vsel %vm277, %v243, %v403
        %v406 = vunpack.c.l.s4 1983009808
        %v407 = vunpack.c.0.s8 %v406
        %v408 = vperm.slane %v402, %v407
        %v410 = vunpack.c.l.s4 1983009808
        %v411 = vunpack.c.0.s8 %v410
        %v412 = vperm.slane %v404, %v411
        %v413 = vrot.slane %v261, 4
        %v414 = vsel %vm277, %v413, %v253
        %v415 = vrot.slane %v253, 4
        %v416 = vsel %vm277, %v261, %v415
        %v418 = vunpack.c.l.s4 1983009808
        %v419 = vunpack.c.0.s8 %v418
        %v420 = vperm.slane %v414, %v419
        %v422 = vunpack.c.l.s4 1983009808
        %v423 = vunpack.c.0.s8 %v422
        %v424 = vperm.slane %v416, %v423
        %v425 = vrot.slane %v265, 4
        %v426 = vsel %vm277, %v425, %v257
        %v427 = vrot.slane %v257, 4
        %v428 = vsel %vm277, %v265, %v427
        %v430 = vunpack.c.l.s4 1983009808
        %v431 = vunpack.c.0.s8 %v430
        %v432 = vperm.slane %v426, %v431
        %v434 = vunpack.c.l.s4 1983009808
        %v435 = vunpack.c.0.s8 %v434
        %v436 = vperm.slane %v428, %v435
        %v437 = vrot.slane %v408, 4
        %v438 = vsel %vm277, %v437, %v396
        %v439 = vrot.slane %v396, 4
        %v440 = vsel %vm277, %v408, %v439
        %v442 = vunpack.c.l.s4 1934713408
        %v443 = vunpack.c.0.s8 %v442
        %v444 = vperm.slane %v438, %v443
        %v446 = vunpack.c.l.s4 1934713408
        %v447 = vunpack.c.0.s8 %v446
        %v448 = vperm.slane %v440, %v447
        %v449 = vrot.slane %v412, 4
        %v450 = vsel %vm277, %v449, %v400
        %v451 = vrot.slane %v400, 4
        %v452 = vsel %vm277, %v412, %v451
        %v454 = vunpack.c.l.s4 1934713408
        %v455 = vunpack.c.0.s8 %v454
        %v456 = vperm.slane %v450, %v455
        %v458 = vunpack.c.l.s4 1934713408
        %v459 = vunpack.c.0.s8 %v458
        %v460 = vperm.slane %v452, %v459
        %v461 = vrot.slane %v432, 4
        %v462 = vsel %vm277, %v461, %v420
        %v463 = vrot.slane %v420, 4
        %v464 = vsel %vm277, %v432, %v463
        %v466 = vunpack.c.l.s4 1934713408
        %v467 = vunpack.c.0.s8 %v466
        %v468 = vperm.slane %v462, %v467
        %v470 = vunpack.c.l.s4 1934713408
        %v471 = vunpack.c.0.s8 %v470
        %v472 = vperm.slane %v464, %v471
        %v473 = vrot.slane %v436, 4
        %v474 = vsel %vm277, %v473, %v424
        %v475 = vrot.slane %v424, 4
        %v476 = vsel %vm277, %v436, %v475
        %v478 = vunpack.c.l.s4 1934713408
        %v479 = vunpack.c.0.s8 %v478
        %v480 = vperm.slane %v474, %v479
        %v482 = vunpack.c.l.s4 1934713408
        %v483 = vunpack.c.0.s8 %v482
        %v484 = vperm.slane %v476, %v483
        %v485 = vrot.slane %v468, 4
        %v486 = vsel %vm277, %v485, %v444
        %v487 = vrot.slane %v444, 4
        %v488 = vsel %vm277, %v468, %v487
        %v489 = vrot.slane %v472, 4
        %v490 = vsel %vm277, %v489, %v448
        %v491 = vrot.slane %v448, 4
        %v492 = vsel %vm277, %v472, %v491
        %v493 = vrot.slane %v480, 4
        %v494 = vsel %vm277, %v493, %v456
        %v495 = vrot.slane %v456, 4
        %v496 = vsel %vm277, %v480, %v495
        %v497 = vrot.slane %v484, 4
        %v498 = vsel %vm277, %v497, %v460
        %v499 = vrot.slane %v460, 4
        %v500 = vsel %vm277, %v484, %v499
        %v501 = vrot.slane %v196, 4
        %v502 = vsel %vm277, %v501, %v192
        %v503 = vrot.slane %v192, 4
        %v504 = vsel %vm277, %v196, %v503
        %v506 = vunpack.c.l.s4 1983009808
        %v507 = vunpack.c.0.s8 %v506
        %v508 = vperm.slane %v502, %v507
        %v510 = vunpack.c.l.s4 1983009808
        %v511 = vunpack.c.0.s8 %v510
        %v512 = vperm.slane %v504, %v511
        %v513 = vrot.slane %v198, 4
        %v514 = vsel %vm277, %v513, %v194
        %v515 = vrot.slane %v194, 4
        %v516 = vsel %vm277, %v198, %v515
        %v518 = vunpack.c.l.s4 1983009808
        %v519 = vunpack.c.0.s8 %v518
        %v520 = vperm.slane %v514, %v519
        %v522 = vunpack.c.l.s4 1983009808
        %v523 = vunpack.c.0.s8 %v522
        %v524 = vperm.slane %v516, %v523
        %v525 = vrot.slane %v218, 4
        %v526 = vsel %vm277, %v525, %v210
        %v527 = vrot.slane %v210, 4
        %v528 = vsel %vm277, %v218, %v527
        %v530 = vunpack.c.l.s4 1983009808
        %v531 = vunpack.c.0.s8 %v530
        %v532 = vperm.slane %v526, %v531
        %v534 = vunpack.c.l.s4 1983009808
        %v535 = vunpack.c.0.s8 %v534
        %v536 = vperm.slane %v528, %v535
        %v537 = vrot.slane %v222, 4
        %v538 = vsel %vm277, %v537, %v214
        %v539 = vrot.slane %v214, 4
        %v540 = vsel %vm277, %v222, %v539
        %v542 = vunpack.c.l.s4 1983009808
        %v543 = vunpack.c.0.s8 %v542
        %v544 = vperm.slane %v538, %v543
        %v546 = vunpack.c.l.s4 1983009808
        %v547 = vunpack.c.0.s8 %v546
        %v548 = vperm.slane %v540, %v547
        %v549 = vrot.slane %v520, 4
        %v550 = vsel %vm277, %v549, %v508
        %v551 = vrot.slane %v508, 4
        %v552 = vsel %vm277, %v520, %v551
        %v554 = vunpack.c.l.s4 1934713408
        %v555 = vunpack.c.0.s8 %v554
        %v556 = vperm.slane %v550, %v555
        %v558 = vunpack.c.l.s4 1934713408
        %v559 = vunpack.c.0.s8 %v558
        %v560 = vperm.slane %v552, %v559
        %v561 = vrot.slane %v524, 4
        %v562 = vsel %vm277, %v561, %v512
        %v563 = vrot.slane %v512, 4
        %v564 = vsel %vm277, %v524, %v563
        %v566 = vunpack.c.l.s4 1934713408
        %v567 = vunpack.c.0.s8 %v566
        %v568 = vperm.slane %v562, %v567
        %v570 = vunpack.c.l.s4 1934713408
        %v571 = vunpack.c.0.s8 %v570
        %v572 = vperm.slane %v564, %v571
        %v573 = vrot.slane %v544, 4
        %v574 = vsel %vm277, %v573, %v532
        %v575 = vrot.slane %v532, 4
        %v576 = vsel %vm277, %v544, %v575
        %v578 = vunpack.c.l.s4 1934713408
        %v579 = vunpack.c.0.s8 %v578
        %v580 = vperm.slane %v574, %v579
        %v582 = vunpack.c.l.s4 1934713408
        %v583 = vunpack.c.0.s8 %v582
        %v584 = vperm.slane %v576, %v583
        %v585 = vrot.slane %v548, 4
        %v586 = vsel %vm277, %v585, %v536
        %v587 = vrot.slane %v536, 4
        %v588 = vsel %vm277, %v548, %v587
        %v590 = vunpack.c.l.s4 1934713408
        %v591 = vunpack.c.0.s8 %v590
        %v592 = vperm.slane %v586, %v591
        %v594 = vunpack.c.l.s4 1934713408
        %v595 = vunpack.c.0.s8 %v594
        %v596 = vperm.slane %v588, %v595
        %v597 = vrot.slane %v580, 4
        %v598 = vsel %vm277, %v597, %v556
        %v599 = vrot.slane %v556, 4
        %v600 = vsel %vm277, %v580, %v599
        %v601 = vrot.slane %v584, 4
        %v602 = vsel %vm277, %v601, %v560
        %v603 = vrot.slane %v560, 4
        %v604 = vsel %vm277, %v584, %v603
        %v605 = vrot.slane %v592, 4
        %v606 = vsel %vm277, %v605, %v568
        %v607 = vrot.slane %v568, 4
        %v608 = vsel %vm277, %v592, %v607
        %v609 = vrot.slane %v596, 4
        %v610 = vsel %vm277, %v609, %v572
        %v611 = vrot.slane %v239, 4
        %v612 = vsel %vm277, %v611, %v233
        %v613 = vrot.slane %v233, 4
        %v614 = vsel %vm277, %v239, %v613
        %v616 = vunpack.c.l.s4 1983009808
        %v617 = vunpack.c.0.s8 %v616
        %v618 = vperm.slane %v612, %v617
        %v620 = vunpack.c.l.s4 1983009808
        %v621 = vunpack.c.0.s8 %v620
        %v622 = vperm.slane %v614, %v621
        %v623 = vrot.slane %v242, 4
        %v624 = vsel %vm277, %v623, %v236
        %v625 = vrot.slane %v236, 4
        %v626 = vsel %vm277, %v242, %v625
        %v628 = vunpack.c.l.s4 1983009808
        %v629 = vunpack.c.0.s8 %v628
        %v630 = vperm.slane %v624, %v629
        %v632 = vunpack.c.l.s4 1983009808
        %v633 = vunpack.c.0.s8 %v632
        %v634 = vperm.slane %v626, %v633
        %v635 = vrot.slane %v263, 4
        %v636 = vsel %vm277, %v635, %v255
        %v637 = vrot.slane %v255, 4
        %v638 = vsel %vm277, %v263, %v637
        %v640 = vunpack.c.l.s4 1983009808
        %v641 = vunpack.c.0.s8 %v640
        %v642 = vperm.slane %v636, %v641
        %v644 = vunpack.c.l.s4 1983009808
        %v645 = vunpack.c.0.s8 %v644
        %v646 = vperm.slane %v638, %v645
        %v647 = vrot.slane %v267, 4
        %v648 = vsel %vm277, %v647, %v259
        %v649 = vrot.slane %v259, 4
        %v650 = vsel %vm277, %v267, %v649
        %v652 = vunpack.c.l.s4 1983009808
        %v653 = vunpack.c.0.s8 %v652
        %v654 = vperm.slane %v648, %v653
        %v656 = vunpack.c.l.s4 1983009808
        %v657 = vunpack.c.0.s8 %v656
        %v658 = vperm.slane %v650, %v657
        %v659 = vrot.slane %v630, 4
        %v660 = vsel %vm277, %v659, %v618
        %v661 = vrot.slane %v618, 4
        %v662 = vsel %vm277, %v630, %v661
        %v664 = vunpack.c.l.s4 1934713408
        %v665 = vunpack.c.0.s8 %v664
        %v666 = vperm.slane %v660, %v665
        %v668 = vunpack.c.l.s4 1934713408
        %v669 = vunpack.c.0.s8 %v668
        %v670 = vperm.slane %v662, %v669
        %v671 = vrot.slane %v634, 4
        %v672 = vsel %vm277, %v671, %v622
        %v673 = vrot.slane %v622, 4
        %v674 = vsel %vm277, %v634, %v673
        %v676 = vunpack.c.l.s4 1934713408
        %v677 = vunpack.c.0.s8 %v676
        %v678 = vperm.slane %v672, %v677
        %v680 = vunpack.c.l.s4 1934713408
        %v681 = vunpack.c.0.s8 %v680
        %v682 = vperm.slane %v674, %v681
        %v683 = vrot.slane %v654, 4
        %v684 = vsel %vm277, %v683, %v642
        %v685 = vrot.slane %v642, 4
        %v686 = vsel %vm277, %v654, %v685
        %v688 = vunpack.c.l.s4 1934713408
        %v689 = vunpack.c.0.s8 %v688
        %v690 = vperm.slane %v684, %v689
        %v692 = vunpack.c.l.s4 1934713408
        %v693 = vunpack.c.0.s8 %v692
        %v694 = vperm.slane %v686, %v693
        %v695 = vrot.slane %v658, 4
        %v696 = vsel %vm277, %v695, %v646
        %v697 = vrot.slane %v646, 4
        %v698 = vsel %vm277, %v658, %v697
        %v700 = vunpack.c.l.s4 1934713408
        %v701 = vunpack.c.0.s8 %v700
        %v702 = vperm.slane %v696, %v701
        %v704 = vunpack.c.l.s4 1934713408
        %v705 = vunpack.c.0.s8 %v704
        %v706 = vperm.slane %v698, %v705
        %v707 = vrot.slane %v690, 4
        %v708 = vsel %vm277, %v707, %v666
        %v709 = vrot.slane %v666, 4
        %v710 = vsel %vm277, %v690, %v709
        %v711 = vrot.slane %v694, 4
        %v712 = vsel %vm277, %v711, %v670
        %v713 = vrot.slane %v670, 4
        %v714 = vsel %vm277, %v694, %v713
        %v715 = vrot.slane %v702, 4
        %v716 = vsel %vm277, %v715, %v678
        %v717 = vrot.slane %v678, 4
        %v718 = vsel %vm277, %v702, %v717
        %v719 = vrot.slane %v706, 4
        %v720 = vsel %vm277, %v719, %v682
        %723 = vrot.lane.b32.xlu0 %v376, 15
        %v724 = vpop.permute.xlu0 %723
        %725 = vrot.lane.b32.xlu0 %v488, 15
        %v726 = vpop.permute.xlu0 %725
        %731 = vrot.lane.b32.xlu0 %v378, 30
        %v732 = vpop.permute.xlu0 %731
        %733 = vrot.lane.b32.xlu0 %v490, 30
        %v734 = vpop.permute.xlu0 %733
        %739 = vrot.lane.b32.xlu0 %v380, 45
        %v740 = vpop.permute.xlu0 %739
        %741 = vrot.lane.b32.xlu0 %v492, 45
        %v742 = vpop.permute.xlu0 %741
        %747 = vrot.lane.b32.xlu0 %v382, 60
        %v748 = vpop.permute.xlu0 %747
        %749 = vrot.lane.b32.xlu0 %v494, 60
        %v750 = vpop.permute.xlu0 %749
        %755 = vrot.lane.b32.xlu0 %v384, 75
        %v756 = vpop.permute.xlu0 %755
        %757 = vrot.lane.b32.xlu0 %v496, 75
        %v758 = vpop.permute.xlu0 %757
        %763 = vrot.lane.b32.xlu0 %v386, 90
        %v764 = vpop.permute.xlu0 %763
        %765 = vrot.lane.b32.xlu0 %v498, 90
        %v766 = vpop.permute.xlu0 %765
        %771 = vrot.lane.b32.xlu0 %v388, 105
        %v772 = vpop.permute.xlu0 %771
        %773 = vrot.lane.b32.xlu0 %v500, 105
        %v774 = vpop.permute.xlu0 %773
        %779 = vrot.lane.b32.xlu0 %v598, 120
        %v780 = vpop.permute.xlu0 %779
        %781 = vrot.lane.b32.xlu0 %v708, 120
        %v782 = vpop.permute.xlu0 %781
        %787 = vrot.lane.b32.xlu0 %v600, 7
        %v788 = vpop.permute.xlu0 %787
        %789 = vrot.lane.b32.xlu0 %v710, 7
        %v790 = vpop.permute.xlu0 %789
        %795 = vrot.lane.b32.xlu0 %v602, 22
        %v796 = vpop.permute.xlu0 %795
        %797 = vrot.lane.b32.xlu0 %v712, 22
        %v798 = vpop.permute.xlu0 %797
        %803 = vrot.lane.b32.xlu0 %v604, 37
        %v804 = vpop.permute.xlu0 %803
        %805 = vrot.lane.b32.xlu0 %v714, 37
        %v806 = vpop.permute.xlu0 %805
        %811 = vrot.lane.b32.xlu0 %v606, 52
        %v812 = vpop.permute.xlu0 %811
        %813 = vrot.lane.b32.xlu0 %v716, 52
        %v814 = vpop.permute.xlu0 %813
        %819 = vrot.lane.b32.xlu0 %v608, 67
        %v820 = vpop.permute.xlu0 %819
        %821 = vrot.lane.b32.xlu0 %v718, 67
        %v822 = vpop.permute.xlu0 %821
        %827 = vrot.lane.b32.xlu0 %v610, 82
        %v828 = vpop.permute.xlu0 %827
        %829 = vrot.lane.b32.xlu0 %v720, 82
        %v830 = vpop.permute.xlu0 %829
        %vm833 = vcmask 121856
        %v834 = vsel %vm833, %v374, %v724
        %v835 = vsel %vm833, %v486, %v726
        %vm836 = vcmask 244736
        %v837 = vsel %vm836, %v834, %v732
        %v838 = vsel %vm836, %v835, %v734
        %vm839 = vcmask 367616
        %v840 = vsel %vm839, %v837, %v740
        %v841 = vsel %vm839, %v838, %v742
        %vm842 = vcmask 490496
        %v843 = vsel %vm842, %v840, %v748
        %v844 = vsel %vm842, %v841, %v750
        %vm845 = vcmask 613376
        %v846 = vsel %vm845, %v843, %v756
        %v847 = vsel %vm845, %v844, %v758
        %vm848 = vcmask 736256
        %v849 = vsel %vm848, %v846, %v764
        %v850 = vsel %vm848, %v847, %v766
        %vm851 = vcmask 859136
        %v852 = vsel %vm851, %v849, %v772
        %v853 = vsel %vm851, %v850, %v774
        %vm854 = vcmask 982016
        %v855 = vsel %vm854, %v852, %v780
        %v856 = vsel %vm854, %v853, %v782
        %vm857 = vcmask 56320
        %v858 = vsel %vm857, %v780, %v788
        %v859 = vsel %vm857, %v782, %v790
        %vm860 = vcmask 179200
        %v861 = vsel %vm860, %v858, %v796
        %v862 = vsel %vm860, %v859, %v798
        %vm863 = vcmask 302080
        %v864 = vsel %vm863, %v861, %v804
        %v865 = vsel %vm863, %v862, %v806
        %vm866 = vcmask 424960
        %v867 = vsel %vm866, %v864, %v812
        %v868 = vsel %vm866, %v865, %v814
        %vm869 = vcmask 547840
        %v870 = vsel %vm869, %v867, %v820
        %v871 = vsel %vm869, %v868, %v822
        %vm872 = vcmask 670720
        %v873 = vsel %vm872, %v870, %v828
        %v874 = vsel %vm872, %v871, %v830
        %v875 = vld [vmem:[%s1] sm:$0xff]
        %v876 = vld [vmem:[%s2] sm:$0xff]
        %878 = vset.pattern.permute.xlu0 0
        %879 = vperm.xlu0 %878, %v876
        %v880 = vpop.permute.xlu0 %879
        %vm882 = vcmask 130048
        %v884 = vsel %vm882, %v875, 0
        %886 = vmatpush.msra.mxu0 0.0
        %887 = vmatpush.msra.mxu0 0.0
        %888 = vmatpush.msra.mxu0 0.0
        %889 = vmatpush.msra.mxu0 0.0
        %890 = vmatpush.msra.mxu0 0.0
        %891 = vmatpush.msra.mxu0 0.0
        %892 = vmatpush.msra.mxu0 0.0
        %893 = vmatpush.msra.mxu0 0.0
        %894 = vmatpush.msra.mxu0 0.0
        %895 = vmatpush.msra.mxu0 0.0
        %896 = vmatpush.msra.mxu0 0.0
        %897 = vmatpush.msra.mxu0 0.0
        %898 = vmatpush.msra.mxu0 0.0
        %899 = vmatpush.msra.mxu0 0.0
        %900 = vmatpush.msra.mxu0 %v856
        %901 = vmatpush.msra.mxu0 %v855
        %902 = vmatmul.f32.gmra.mxu0 %v884
        %v903 = vpop.f32.mrf.mxu0
        %v904 = vadd.f32 %v880, %v903
        %905 = vdwg.mxu0
        %906 = vmatpush.msra.mxu0 0.0
        %907 = vmatpush.msra.mxu0 0.0
        %908 = vmatpush.msra.mxu0 0.0
        %909 = vmatpush.msra.mxu0 0.0
        %910 = vmatpush.msra.mxu0 0.0
        %911 = vmatpush.msra.mxu0 0.0
        %912 = vmatpush.msra.mxu0 0.0
        %913 = vmatpush.msra.mxu0 0.0
        %914 = vmatpush.msra.mxu0 0.0
        %915 = vmatpush.msra.mxu0 0.0
        %916 = vmatpush.msra.mxu0 0.0
        %917 = vmatpush.msra.mxu0 0.0
        %918 = vmatpush.msra.mxu0 0.0
        %919 = vmatpush.msra.mxu0 0.0
        %920 = vmatpush.msra.mxu0 %v874
        %921 = vmatpush.msra.mxu0 %v873
        %922 = vmatmul.f32.gmra.mxu0 %v884
        %v923 = vpop.f32.mrf.mxu0
        %v924 = vadd.f32 %v880, %v923
        %925 = vdwg.mxu0
        %926 = vst [vmem:[%s190] sm:$0xff] %v904
        %vm927 = vcmask 793600
        %928 = vst.msk [vmem:[%s190 + $0x8] sm:$0xff] %vm927, %v924
        %s929 = sand.u32 %s96, 1
        %s930 = scalar_lea.sflag [#allocation4], %s929
        %s931 = sand.u32 %s96, 1
        %s932 = smul.addr %s931, 16
        %s933 = scalar_lea.vmem [#allocation5], %s932
        // Predicated region
        $region37: #{tpu_custom_call.1} parent=31 // pred_check
          %p934 = pneg %p106
        $region38: #{tpu_custom_call.1} parent=31 // pred_check_branch
          %936 = sbr.rel (%p934) target = $region40
        $region39: #{tpu_custom_call.1} parent=31 // pred_region
          %938 = vsyncadd %s930, 0
          %s939 = smul.addr %s20, 2
          %s940 = smul.addr %s939, 8
          %s941 = scalar_lea.hbm %s3, %s940
          %s943 = sshll.u32 %s933, 4
          %s944 = int_to_ptr.vmem [resolvable:$true] %s943
          %s945 = sshll.u32 %s941, 4
          %s946 = int_to_ptr.hbm [resolvable:$true] %s945
          %948 = dma.vmem_to_hbm [thread:$0]  %s944, 256, %s946, %s930
        $region40: #{tpu_custom_call.1} parent=31 // pred_fallthru
          _
      $region32: #{tpu_custom_call.1} parent=5 // pred_fallthru
        _
      %p949 = scmp.le.s32.totalorder 2, %s15
      // Predicated region
      $region41: #{tpu_custom_call.1} parent=5 // pred_check
        %p950 = pneg %p949
      $region42: #{tpu_custom_call.1} parent=5 // pred_check_branch
        %952 = sbr.rel (%p950) target = $region44
      $region43: #{tpu_custom_call.1} parent=5 // pred_region
        %s953 = ssub.s32 %s15, 2
        // Predicated region
        $region45: #{tpu_custom_call.1} parent=43 // pred_check
          %p954 = pneg %p112
        $region46: #{tpu_custom_call.1} parent=43 // pred_check_branch
          %956 = sbr.rel (%p954) target = $region48
        $region47: #{tpu_custom_call.1} parent=43 // pred_region
          %s957 = sand.u32 %s97, 1
          %s958 = scalar_lea.sflag [#allocation4], %s957
          %s959 = sand.u32 %s97, 1
          %s960 = smul.addr %s959, 16
          %s961 = scalar_lea.vmem [#allocation5], %s960
          %963 = dma.done %s958, 256
        $region48: #{tpu_custom_call.1} parent=43 // pred_fallthru
          _
      $region44: #{tpu_custom_call.1} parent=5 // pred_fallthru
        _
    $region6: #{tpu_custom_call.1} parent=1 // loop_footer
      %s19 = sadd.s32 1, %s15
    $region7: #{tpu_custom_call.1} parent=1 // loop_footer_branch
      %14 = sbr.rel target = $region3
    $region8: #{tpu_custom_call.1} parent=1 // loop_exit
      _
    %964 = vsyncpa [#allocation3], 1
    %s965 = scalar_lea.sflag [#allocation3], 1
    %966 = vsyncpa %s965, 1
    %967 = vsyncpa [#allocation4], 1
    %s968 = scalar_lea.sflag [#allocation4], 1
    %969 = vsyncpa %s968, 1

</llo_original>
